<compile_context>
chip_gen: v5e
topology: v5e:2x2
jax: 0.10.0
libtpu: 0.0.40
codegen_flags: <defaults>
</compile_context>

<pallas_src>
import math
import numpy as np
import jax
import jax.numpy as jnp
from jax import lax
from jax.experimental import pallas as pl
from jax.experimental.pallas import tpu as pltpu


# ----------------------------------------------------------------------------
# upfirdn2d (up=2) as two tiny separable 1-D operators (numpy, KiB-sized).
# ----------------------------------------------------------------------------
def _make_blur_kernel_1d(k=(1.0, 3.0, 3.0, 1.0), factor=2):
    # make_kernel -> outer(k,k)/sum ; Upsample multiplies by factor**2.
    # Separable per-axis factor:  k / sum(k) * factor  ( = [0.25,0.75,0.75,0.25]).
    k = np.asarray(k, np.float32)
    return k / k.sum() * factor


def _upfirdn_up2_matrix(n_in, k1d, pad0=2, pad1=1):
    """1-D operator U (2*n_in, n_in) s.t. y = U @ x reproduces torch upfirdn2d
    along one axis with up=2, down=1, pad=(pad0, pad1)."""
    K = len(k1d)
    n_out = 2 * n_in + pad0 + pad1 - K + 1
    kf = k1d[::-1]  # torch upfirdn convolves with the flipped kernel
    U = np.zeros((n_out, n_in), np.float32)
    for n in range(n_out):
        for i in range(n_in):
            j = 2 * i + pad0 - n
            if 0 <= j < K:
                U[n, i] = kf[j]
    return U


def _upsample_skip(skip, out_dtype=jnp.float32):
    """upfirdn2d(skip, up=2, k=[1,3,3,1], pad=(2,1)) as Uh @ skip @ Uw^T.
    Two tiny banded operators (KiB) — never a dense (HW, HsWs) kron."""
    _, _, hs, ws = skip.shape
    k1d = _make_blur_kernel_1d()
    uh = jnp.asarray(_upfirdn_up2_matrix(hs, k1d))        # (2*hs, hs)
    uw = jnp.asarray(_upfirdn_up2_matrix(ws, k1d))        # (2*ws, ws)
    up = jnp.einsum("hs,bcsv,wv->bchw", uh, skip.astype(jnp.float32), uw,
                    precision="highest")                  # (B, 3, H, W) f32
    return up.astype(out_dtype)                           # cast fused by XLA


# ----------------------------------------------------------------------------
# Tiling helper: budget-driven lane-dense tile (multiple of 128 dividing HW).
# ----------------------------------------------------------------------------
def _pick_hw_tile(hw, c, x_itemsize, out_itemsize, up_itemsize=0, batch=1,
                  vmem_budget_bytes=16 << 20):
    """Largest multiple of 128 dividing hw such that the double-buffered
    per-step footprint 2*(C*t*x + 3*t*out [+ 3*t*up]) stays under the budget
    (budget fits the 32 MiB scoped VMEM limit on v5e/v6e/v7x with headroom).
    Also guarantees >= 2 total grid steps when batch == 1 (v7x megacore)."""
    assert hw % 128 == 0
    per_lane = 2 * (c * x_itemsize + 3 * out_itemsize + 3 * up_itemsize)
    t = max(128, (vmem_budget_bytes // per_lane) // 128 * 128)
    t = int(min(hw, t))
    if batch == 1 and hw >= 256:
        t = min(t, hw // 2)            # force >=2 grid steps -> both v7x TCs busy
    t = max(128, (t // 128) * 128)
    while hw % t:
        t -= 128
    return t


# ----------------------------------------------------------------------------
# Pallas kernels: grid = (batch, hw_tile).  One lane-dense MXU matmul per step.
# x arrives in its native dtype and is cast to the (bf16) compute dtype on the
# VPU; accumulation / bias / skip adds are f32 (safe on v5e: no bf16 VPU used).
# ----------------------------------------------------------------------------
def _torgb_kernel(modw_ref, x_ref, bias_ref, out_ref):
    xb = x_ref[0].astype(modw_ref.dtype)
    conv = jnp.dot(modw_ref[0], xb, preferred_element_type=jnp.float32)
    out_ref[0] = (conv + bias_ref[...]).astype(out_ref.dtype)


def _torgb_skip_kernel(modw_ref, x_ref, up_ref, bias_ref, out_ref):
    xb = x_ref[0].astype(modw_ref.dtype)
    conv = jnp.dot(modw_ref[0], xb, preferred_element_type=jnp.float32)
    out_ref[0] = (conv + bias_ref[...]
                  + up_ref[0].astype(jnp.float32)).astype(out_ref.dtype)


# ----------------------------------------------------------------------------
# Parameters (deterministic, mirrors nn.Module.__init__ shapes)
# ----------------------------------------------------------------------------
def init_torgb_params(key, in_channel, style_dim):
    k0, k1 = jax.random.split(key)
    return dict(
        w0=jax.random.normal(k0, (3, in_channel), jnp.float32),          # conv.weight[0,:,:,0,0]
        wm=jax.random.normal(k1, (in_channel, style_dim), jnp.float32),  # modulation.weight
        bm=jnp.ones((in_channel,), jnp.float32),                         # modulation.bias (bias_init=1)
        bias=jnp.zeros((3,), jnp.float32),                               # ToRGB.bias
        conv_scale=1.0 / math.sqrt(in_channel * 1 * 1),
        mod_scale=1.0 / math.sqrt(style_dim),
    )


# ----------------------------------------------------------------------------
# Wrapper
# ----------------------------------------------------------------------------
def to_rgb(params, x, style, skip=None, *, compute_dtype=jnp.bfloat16,
           out_dtype=jnp.float32, use_pallas=None, min_pallas_bytes=256 * 1024):
    B, C, H, W = x.shape
    HW = H * W

    # --- style modulation hoisted to XLA (tiny batched matmul): s = style @ (Wm*scale)^T + 1
    wm_t = (params["wm"] * params["mod_scale"]).T                               # (S, C)
    s = jnp.dot(style, wm_t, precision="highest") + params["bm"][None, :]       # (B, C)
    # modulated 1x1-conv weight (demodulate=False), conv scale folded in: (B, 3, C)
    modw_f32 = (params["w0"] * params["conv_scale"])[None, :, :] * s[:, None, :]

    if skip is not None:
        Bs, Cs, Hs, Ws = skip.shape
        assert Bs == B and Cs == 3 and 2 * Hs == H and 2 * Ws == W

    # --- dispatch: tiny / oddly-shaped layers run as a fused XLA op instead of
    # paying pallas_call fixed cost + masked partial stores.
    if use_pallas is None:
        use_pallas = (HW % 128 == 0) and (C * HW * x.dtype.itemsize >= min_pallas_bytes)

    if not use_pallas:
        out = jnp.einsum("boc,bchw->bohw", modw_f32, x.astype(jnp.float32),
                         precision="highest")
        out = out + params["bias"].reshape(1, 3, 1, 1)
        if skip is not None:
            out = out + _upsample_skip(skip, jnp.float32)
        return out.astype(out_dtype)

    # --- Pallas path ---------------------------------------------------------
    modw = modw_f32.astype(compute_dtype)               # (B, 3, C), tiny
    x_flat = x.reshape(B, C, HW)                        # metadata reshape only — no dtype copy
    bias = params["bias"].reshape(3, 1).astype(jnp.float32)

    up_itemsize = jnp.dtype(compute_dtype).itemsize if skip is not None else 0
    thw = _pick_hw_tile(HW, C, x.dtype.itemsize, jnp.dtype(out_dtype).itemsize,
                        up_itemsize, B)
    grid = (B, HW // thw)

    cparams = pltpu.CompilerParams(
        dimension_semantics=("parallel", "parallel"),   # megacore-friendly on v7x
        vmem_limit_bytes=32 * 1024 * 1024,              # tiles budgeted well below
    )
    out_shape = jax.ShapeDtypeStruct((B, 3, HW), out_dtype)

    modw_spec = pl.BlockSpec((1, 3, C), lambda b, t: (b, 0, 0))
    x_spec = pl.BlockSpec((1, C, thw), lambda b, t: (b, 0, t))
    bias_spec = pl.BlockSpec((3, 1), lambda b, t: (0, 0))
    out_spec = pl.BlockSpec((1, 3, thw), lambda b, t: (b, 0, t))

    if skip is None:
        out = pl.pallas_call(
            _torgb_kernel,
            out_shape=out_shape,
            grid_spec=pltpu.PrefetchScalarGridSpec(
                num_scalar_prefetch=0,
                grid=grid,
                in_specs=[modw_spec, x_spec, bias_spec],
                out_specs=out_spec,
            ),
            compiler_params=cparams,
        )(modw, x_flat, bias)
    else:
        # Separable upsample in the wrapper, streamed to the kernel in the
        # compute dtype (bf16 default -> half the f32 skip-stream bytes); the
        # kernel upcasts to f32 for the add.
        up_flat = _upsample_skip(skip, compute_dtype).reshape(B, 3, HW)
        up_spec = pl.BlockSpec((1, 3, thw), lambda b, t: (b, 0, t))
        out = pl.pallas_call(
            _torgb_skip_kernel,
            out_shape=out_shape,
            grid_spec=pltpu.PrefetchScalarGridSpec(
                num_scalar_prefetch=0,
                grid=grid,
                in_specs=[modw_spec, x_spec, up_spec, bias_spec],
                out_specs=out_spec,
            ),
            compiler_params=cparams,
        )(modw, x_flat, up_flat, bias)

    return out.reshape(B, 3, H, W)


# ----------------------------------------------------------------------------
# Pure-JAX reference (mirrors torch semantics) for correctness checks
# ----------------------------------------------------------------------------
def _reference_upsample(skip):
    k = np.array([1.0, 3.0, 3.0, 1.0], np.float32)
    k2 = np.outer(k, k)
    k2 = k2 / k2.sum() * 4.0                                       # Upsample kernel
    w = jnp.asarray(np.tile(k2[None, None], (3, 1, 1, 1)))         # depthwise (3,1,4,4)
    return lax.conv_general_dilated(
        skip, w, window_strides=(1, 1), padding=((2, 2), (2, 2)),
        lhs_dilation=(2, 2), rhs_dilation=(1, 1),
        dimension_numbers=("NCHW", "OIHW", "NCHW"), feature_group_count=3,
        precision="highest")


def to_rgb_reference(params, x, style, skip=None):
    s = jnp.dot(style, (params["wm"] * params["mod_scale"]).T,
                precision="highest") + params["bm"]
    weight = params["conv_scale"] * params["w0"][None] * s[:, None, :]  # (B, 3, C)
    out = jnp.einsum("boc,bchw->bohw", weight, x, precision="highest")
    out = out + params["bias"].reshape(1, 3, 1, 1)
    if skip is not None:
        out = out + _reference_upsample(skip)
    return out


if __name__ == "__main__":
    key = jax.random.PRNGKey(0)
    kp, kx, ks, kk = jax.random.split(key, 4)

    B, C_in, H, W, S = 2, 16, 64, 64, 32
    params = init_torgb_params(kp, C_in, S)
    x = jax.random.normal(kx, (B, C_in, H, W), jnp.float32)
    style = jax.random.normal(ks, (B, S), jnp.float32)
    skip = jax.random.normal(kk, (B, 3, H // 2, W // 2), jnp.float32)

    ref_skip = to_rgb_reference(params, x, style, skip)
    ref_none = to_rgb_reference(params, x, style, None)

    # Tolerance rationale: operands are rounded to bf16 (~2^-8 relative) before
    # the MXU contraction over C=16 channels -> worst observed error ~2e-2.
    TOL = 3e-2

    # Default fast path: f32 x streamed, bf16 compute, f32 output (force Pallas).
    out = jax.block_until_ready(to_rgb(params, x, style, skip, use_pallas=True))
    np.testing.assert_allclose(np.asarray(out), np.asarray(ref_skip), rtol=TOL, atol=TOL)
    out = jax.block_until_ready(to_rgb(params, x, style, None, use_pallas=True))
    np.testing.assert_allclose(np.asarray(out), np.asarray(ref_none), rtol=TOL, atol=TOL)

    # bf16 output writeback (f32 accumulation inside, one rounding at the store).
    out_bf16 = jax.block_until_ready(
        to_rgb(params, x, style, skip, out_dtype=jnp.bfloat16, use_pallas=True))
    np.testing.assert_allclose(np.asarray(out_bf16).astype(np.float32),
                               np.asarray(ref_skip), rtol=4e-2, atol=4e-2)

    # float32 compute path (used below for the structural skip-path check).
    out_f32_skip = jax.block_until_ready(
        to_rgb(params, x, style, skip, compute_dtype=jnp.float32, use_pallas=True))
    np.testing.assert_allclose(np.asarray(out_f32_skip), np.asarray(ref_skip), rtol=TOL, atol=TOL)
    out_f32_none = jax.block_until_ready(
        to_rgb(params, x, style, None, compute_dtype=jnp.float32, use_pallas=True))
    np.testing.assert_allclose(np.asarray(out_f32_none), np.asarray(ref_none), rtol=TOL, atol=TOL)

    # Tight structural check of the skip-upsample path: the two f32 kernel calls
    # share an identical conv, so their difference isolates the fused skip add;
    # it must match the reference upfirdn2d upsample to ~f32 precision.
    up_from_kernel = np.asarray(out_f32_skip) - np.asarray(out_f32_none)
    np.testing.assert_allclose(up_from_kernel, np.asarray(_reference_upsample(skip)),
                               rtol=1e-5, atol=1e-5)

    # Tiny-layer auto-dispatch: HW = 144 is not 128-aligned, so the wrapper
    # should route to the fused XLA path and still match the reference.
    H2 = W2 = 12
    x2 = jax.random.normal(kx, (B, C_in, H2, W2), jnp.float32)
    skip2 = jax.random.normal(kk, (B, 3, H2 // 2, W2 // 2), jnp.float32)
    ref2 = to_rgb_reference(params, x2, style, skip2)
    out2 = jax.block_until_ready(to_rgb(params, x2, style, skip2))
    np.testing.assert_allclose(np.asarray(out2), np.asarray(ref2), rtol=1e-4, atol=1e-4)

    print("KERNEL_OK")
</pallas_src>

<mosaic_0001>
module attributes {stable_mosaic.version = 11 : i64} {
  func.func @_torgb_skip_kernel(%arg0: i32, %arg1: i32, %arg2: memref<1x3x16xbf16, #tpu.memory_space<vmem>>, %arg3: memref<1x16x4096xf32, #tpu.memory_space<vmem>>, %arg4: memref<1x3x4096xbf16, #tpu.memory_space<vmem>>, %arg5: memref<3x1xf32, #tpu.memory_space<vmem>>, %arg6: memref<1x3x4096xf32, #tpu.memory_space<vmem>>) attributes {dimension_semantics = [#tpu.dimension_semantics<parallel>, #tpu.dimension_semantics<parallel>], iteration_bounds = array<i64: 2, 1>, scalar_prefetch = 0 : i64, scratch_operands = 0 : i64, tpu.core_type = #tpu.core_type<tc>, window_params = [{transform_indices = @transform_0, window_bounds = array<i64: 1, 3, 16>}, {transform_indices = @transform_1, window_bounds = array<i64: 1, 16, 4096>}, {transform_indices = @transform_2, window_bounds = array<i64: 1, 3, 4096>}, {pipeline_mode = #tpu.pipeline_mode<synchronous>, transform_indices = @transform_3, window_bounds = array<i64: 3, 1>}, {transform_indices = @transform_4, window_bounds = array<i64: 1, 3, 4096>}]} {
    %c0 = arith.constant 0 : index
    %c0_0 = arith.constant 0 : index
    %c0_1 = arith.constant 0 : index
    %0 = vector.load %arg3[%c0, %c0_0, %c0_1] : memref<1x16x4096xf32, #tpu.memory_space<vmem>>, vector<1x16x4096xf32>
    %1 = vector.shape_cast %0 : vector<1x16x4096xf32> to vector<16x4096xf32>
    %2 = arith.truncf %1 : vector<16x4096xf32> to vector<16x4096xbf16>
    %c0_2 = arith.constant 0 : index
    %c0_3 = arith.constant 0 : index
    %c0_4 = arith.constant 0 : index
    %3 = vector.load %arg2[%c0_2, %c0_3, %c0_4] : memref<1x3x16xbf16, #tpu.memory_space<vmem>>, vector<1x3x16xbf16>
    %4 = vector.shape_cast %3 : vector<1x3x16xbf16> to vector<3x16xbf16>
    %cst = arith.constant dense<0.000000e+00> : vector<3x4096xf32>
    %5 = tpu.matmul %4, %2, %cst {dimension_numbers = #tpu.dot_dimension_numbers<[1], [0], [0], [1], [0, 0, 1, 1], [], []>} : vector<3x16xbf16>, vector<16x4096xbf16>, vector<3x4096xf32> -> vector<3x4096xf32>
    %c0_5 = arith.constant 0 : index
    %c0_6 = arith.constant 0 : index
    %6 = vector.load %arg5[%c0_5, %c0_6] : memref<3x1xf32, #tpu.memory_space<vmem>>, vector<3x1xf32>
    %7 = vector.broadcast %6 : vector<3x1xf32> to vector<3x4096xf32>
    %8 = arith.addf %5, %7 : vector<3x4096xf32>
    %c0_7 = arith.constant 0 : index
    %c0_8 = arith.constant 0 : index
    %c0_9 = arith.constant 0 : index
    %9 = vector.load %arg4[%c0_7, %c0_8, %c0_9] : memref<1x3x4096xbf16, #tpu.memory_space<vmem>>, vector<1x3x4096xbf16>
    %10 = vector.shape_cast %9 : vector<1x3x4096xbf16> to vector<3x4096xbf16>
    %11 = arith.extf %10 : vector<3x4096xbf16> to vector<3x4096xf32>
    %12 = arith.addf %8, %11 : vector<3x4096xf32>
    %c0_10 = arith.constant 0 : index
    %c0_11 = arith.constant 0 : index
    %c0_12 = arith.constant 0 : index
    %13 = vector.load %arg6[%c0_10, %c0_11, %c0_12] : memref<1x3x4096xf32, #tpu.memory_space<vmem>>, vector<1x3x4096xf32>
    %14 = vector.shape_cast %13 : vector<1x3x4096xf32> to vector<3x4096xf32>
    %15 = vector.shape_cast %12 : vector<3x4096xf32> to vector<1x3x4096xf32>
    tpu.vector_store %arg6[%c0_10, %c0_11, %c0_12], %15 {strides = array<i32>} : memref<1x3x4096xf32, #tpu.memory_space<vmem>>, vector<1x3x4096xf32>,
    return
  }
  func.func @transform_0(%arg0: i32, %arg1: i32) -> (i32, i32, i32) {
    %c0_i32 = arith.constant 0 : i32
    %c0_i32_0 = arith.constant 0 : i32
    %c0_i32_1 = arith.constant 0 : i32
    return %arg0, %c0_i32, %c0_i32_0 : i32, i32, i32
  }
  func.func @transform_1(%arg0: i32, %arg1: i32) -> (i32, i32, i32) {
    %c0_i32 = arith.constant 0 : i32
    %c0_i32_0 = arith.constant 0 : i32
    return %arg0, %c0_i32, %arg1 : i32, i32, i32
  }
  func.func @transform_2(%arg0: i32, %arg1: i32) -> (i32, i32, i32) {
    %c0_i32 = arith.constant 0 : i32
    %c0_i32_0 = arith.constant 0 : i32
    return %arg0, %c0_i32, %arg1 : i32, i32, i32
  }
  func.func @transform_3(%arg0: i32, %arg1: i32) -> (i32, i32) {
    %c0_i32 = arith.constant 0 : i32
    %c0_i32_0 = arith.constant 0 : i32
    %c0_i32_1 = arith.constant 0 : i32
    return %c0_i32, %c0_i32_0 : i32, i32
  }
  func.func @transform_4(%arg0: i32, %arg1: i32) -> (i32, i32, i32) {
    %c0_i32 = arith.constant 0 : i32
    %c0_i32_0 = arith.constant 0 : i32
    return %arg0, %c0_i32, %arg1 : i32, i32, i32
  }
}

</mosaic_0001>

<llo_original>
// kernel: tpu_custom_call.1
$region0: #{tpu_custom_call.1}
  #allocation0 [shape = 'u32[]', space=smem, size = 0x4, offset = 0x4, fixed_abs, tag = 'smem constant byte address 0x4 - core index']
  #allocation1 [shape = 'u32[72,128]{1,0:T(1,128)}', space=vmem, size = 0x9000, scoped, tag = 'internal scratch']
  %s0 = inlined_call_operand.vmem [shape: bf16[2,3,16], index: 0, kind: input, shape index: {}]
  %s1 = inlined_call_operand.hbm [shape: f32[2,16,4096], index: 1, kind: input, shape index: {}]
  %s2 = inlined_call_operand.vmem [shape: bf16[2,3,4096], index: 2, kind: input, shape index: {}]
  %s3 = inlined_call_operand.vmem [shape: f32[3,1], index: 3, kind: input, shape index: {}]
  %s4 = inlined_call_operand.vmem [shape: f32[2,3,4096], index: 4, kind: output, shape index: {}]
  %s5 = sld [smem:[#allocation0]]
  $region53: #{tpu_custom_call.1} parent=0
    _
  %s7 = ssub.s32 1, %s5
  %s8 = scalar_select 0, %s7, %s5
  $region1: #{tpu_custom_call.1} parent=0
    #allocation2 [shape = 'u8[524288]{0}', space=vmem, size = 0x80000, scoped, tag = 'input window, operand 1']
    #allocation3 [shape = 's32[2]{0}', space=sflag, size = 0x8, scoped, tag = 'scoped memory for tpu_custom_call.1']
    %9 = vsyncpa [#allocation3], 0
    %s10 = scalar_lea.sflag [#allocation3], 1
    %11 = vsyncpa %s10, 0
    loop: start=0, step=1, limit=4
    $region2: #{tpu_custom_call.1} parent=1 // loop_pre_header
      _
    $region3: #{tpu_custom_call.1} parent=1 // loop_header
      %s13 = sphi 0, %s17
      %p14 = scmp.ge.s32.totalorder %s13, 4
      %s20 = sphi 0, %s32
      %s21 = sphi 0, %s28
      %s22 = sphi 0, %s20
      %s23 = sphi 0, %s21
      %s24 = sphi 0, %s22
      %s25 = sphi 0, %s23
      %s35 = sphi 0, %s37
      %s38 = sphi 0, %s35
      %s39 = sphi 0, %s38
      %s55 = sphi 0, %s39
      %s63 = sphi 0, %s65
      %s66 = sphi 0, %s63
      %s67 = sphi 0, %s66
      %s83 = sphi 0, %s67
      %s91 = sphi 0, %s93
      %s94 = sphi 0, %s91
      %s95 = sphi 0, %s94
      %s111 = sphi 0, %s95
      %s115 = sphi 0, %s115
      %s117 = sphi 0, %s115
      %s118 = sphi 0, %s117
      %s132 = sphi 0, %s118
      %s140 = sphi 0, %s142
      %s143 = sphi 0, %s140
      %s144 = sphi 0, %s143
      %s160 = sphi 0, %s144
    $region4: #{tpu_custom_call.1} parent=1 // loop_header_branch
      %16 = sbr.rel (%p14) target = $region8
    $region5: #{tpu_custom_call.1} parent=1 // loop_body
      %s18 = ssub.s32 %s13, 1
      %s19 = ssub.s32 %s13, 2
      %s26 = sadd.s32 1, %s21
      %p27 = scmp.ge.s32.totalorder %s26, 1
      %s28 = scalar_select %p27, 0, %s26
      %s29 = sadd.s32 1, %s20
      %s30 = scalar_select %p27, %s29, %s20
      %p31 = scmp.ge.s32.totalorder %s30, 2
      %s32 = scalar_select %p31, 0, %s30
      %s33 = ssub.s32 %s20, %s32
      %p34 = scmp.eq.s32.totalorder %s33, 0
      %s36 = sadd.s32 %s35, 1
      %s37 = scalar_select %p34, %s35, %s36
      %p40 = pneg %p34
      %p41 = scmp.eq.s32.totalorder %s13, 1
      %p42 = por %p40, %p41
      %p43 = scmp.ne.s32.totalorder %s35, %s38
      %p44 = scmp.eq.s32.totalorder %s13, 0
      %p45 = por %p43, %p44
      %p46 = scmp.ne.s32.totalorder %s35, %s38
      %p47 = scmp.eq.s32.totalorder %s18, 1
      %p48 = por %p46, %p47
      %p49 = scmp.ne.s32.totalorder %s38, %s39
      %p50 = scmp.eq.s32.totalorder %s18, 0
      %p51 = por %p49, %p50
      %p52 = scmp.ne.s32.totalorder %s38, %s39
      %p53 = scmp.eq.s32.totalorder %s19, 1
      %p54 = por %p52, %p53
      %p56 = scmp.ne.s32.totalorder %s39, %s55
      %p57 = scmp.eq.s32.totalorder %s19, 0
      %p58 = por %p56, %p57
      %s59 = ssub.s32 %s20, %s32
      %s60 = ssub.s32 %s21, %s28
      %s61 = sor.u32 %s59, %s60
      %p62 = scmp.eq.s32.totalorder %s61, 0
      %s64 = sadd.s32 %s63, 1
      %s65 = scalar_select %p62, %s63, %s64
      %p68 = pneg %p62
      %p69 = scmp.eq.s32.totalorder %s13, 1
      %p70 = por %p68, %p69
      %p71 = scmp.ne.s32.totalorder %s63, %s66
      %p72 = scmp.eq.s32.totalorder %s13, 0
      %p73 = por %p71, %p72
      %p74 = scmp.ne.s32.totalorder %s63, %s66
      %p75 = scmp.eq.s32.totalorder %s18, 1
      %p76 = por %p74, %p75
      %p77 = scmp.ne.s32.totalorder %s66, %s67
      %p78 = scmp.eq.s32.totalorder %s18, 0
      %p79 = por %p77, %p78
      %p80 = scmp.ne.s32.totalorder %s66, %s67
      %p81 = scmp.eq.s32.totalorder %s19, 1
      %p82 = por %p80, %p81
      %p84 = scmp.ne.s32.totalorder %s67, %s83
      %p85 = scmp.eq.s32.totalorder %s19, 0
      %p86 = por %p84, %p85
      %s87 = ssub.s32 %s20, %s32
      %s88 = ssub.s32 %s21, %s28
      %s89 = sor.u32 %s87, %s88
      %p90 = scmp.eq.s32.totalorder %s89, 0
      %s92 = sadd.s32 %s91, 1
      %s93 = scalar_select %p90, %s91, %s92
      %p96 = pneg %p90
      %p97 = scmp.eq.s32.totalorder %s13, 1
      %p98 = por %p96, %p97
      %p99 = scmp.ne.s32.totalorder %s91, %s94
      %p100 = scmp.eq.s32.totalorder %s13, 0
      %p101 = por %p99, %p100
      %p102 = scmp.ne.s32.totalorder %s91, %s94
      %p103 = scmp.eq.s32.totalorder %s18, 1
      %p104 = por %p102, %p103
      %p105 = scmp.ne.s32.totalorder %s94, %s95
      %p106 = scmp.eq.s32.totalorder %s18, 0
      %p107 = por %p105, %p106
      %p108 = scmp.ne.s32.totalorder %s94, %s95
      %p109 = scmp.eq.s32.totalorder %s19, 1
      %p110 = por %p108, %p109
      %p112 = scmp.ne.s32.totalorder %s95, %s111
      %p113 = scmp.eq.s32.totalorder %s19, 0
      %p114 = por %p112, %p113
      %s116 = sadd.s32 %s115, 1
      %p119 = scmp.eq.s32.totalorder %s13, 1
      %p120 = scmp.ne.s32.totalorder %s115, %s117
      %p121 = scmp.eq.s32.totalorder %s13, 0
      %p122 = por %p120, %p121
      %p123 = scmp.ne.s32.totalorder %s115, %s117
      %p124 = scmp.eq.s32.totalorder %s18, 1
      %p125 = por %p123, %p124
      %p126 = scmp.ne.s32.totalorder %s117, %s118
      %p127 = scmp.eq.s32.totalorder %s18, 0
      %p128 = por %p126, %p127
      %p129 = scmp.ne.s32.totalorder %s117, %s118
      %p130 = scmp.eq.s32.totalorder %s19, 1
      %p131 = por %p129, %p130
      %p133 = scmp.ne.s32.totalorder %s118, %s132
      %p134 = scmp.eq.s32.totalorder %s19, 0
      %p135 = por %p133, %p134
      %s136 = ssub.s32 %s20, %s32
      %s137 = ssub.s32 %s21, %s28
      %s138 = sor.u32 %s136, %s137
      %p139 = scmp.eq.s32.totalorder %s138, 0
      %s141 = sadd.s32 %s140, 1
      %s142 = scalar_select %p139, %s140, %s141
      %p145 = pneg %p139
      %p146 = scmp.eq.s32.totalorder %s13, 1
      %p147 = por %p145, %p146
      %p148 = scmp.ne.s32.totalorder %s140, %s143
      %p149 = scmp.eq.s32.totalorder %s13, 0
      %p150 = por %p148, %p149
      %p151 = scmp.ne.s32.totalorder %s140, %s143
      %p152 = scmp.eq.s32.totalorder %s18, 1
      %p153 = por %p151, %p152
      %p154 = scmp.ne.s32.totalorder %s143, %s144
      %p155 = scmp.eq.s32.totalorder %s18, 0
      %p156 = por %p154, %p155
      %p157 = scmp.ne.s32.totalorder %s143, %s144
      %p158 = scmp.eq.s32.totalorder %s19, 1
      %p159 = por %p157, %p158
      %p161 = scmp.ne.s32.totalorder %s144, %s160
      %p162 = scmp.eq.s32.totalorder %s19, 0
      %p163 = por %p161, %p162
      %p164 = scmp.le.s32.totalorder 1, %s13
      %p165 = scmp.lt.s32.totalorder %s13, 3
      %p166 = pnand %p164, %p165
      %p167 = pneg %p166
      // Predicated region
      $region9: #{tpu_custom_call.1} parent=5 // pred_check
        _
      $region10: #{tpu_custom_call.1} parent=5 // pred_check_branch
        %169 = sbr.rel (%p166) target = $region12
      $region11: #{tpu_custom_call.1} parent=5 // pred_region
        %s170 = ssub.s32 %s13, 1
        // Predicated region
        $region13: #{tpu_custom_call.1} parent=11 // pred_check
          %p171 = pneg %p128
        $region14: #{tpu_custom_call.1} parent=11 // pred_check_branch
          %173 = sbr.rel (%p171) target = $region16
        $region15: #{tpu_custom_call.1} parent=11 // pred_region
          _
        $region16: #{tpu_custom_call.1} parent=11 // pred_fallthru
          _
      $region12: #{tpu_custom_call.1} parent=5 // pred_fallthru
        _
      %p174 = scmp.lt.s32.totalorder %s13, 2
      // Predicated region
      $region17: #{tpu_custom_call.1} parent=5 // pred_check
        %p175 = pneg %p174
      $region18: #{tpu_custom_call.1} parent=5 // pred_check_branch
        %177 = sbr.rel (%p175) target = $region20
      $region19: #{tpu_custom_call.1} parent=5 // pred_region
        // Predicated region
        $region21: #{tpu_custom_call.1} parent=19 // pred_check
          %p178 = pneg %p45
        $region22: #{tpu_custom_call.1} parent=19 // pred_check_branch
          %180 = sbr.rel (%p178) target = $region24
        $region23: #{tpu_custom_call.1} parent=19 // pred_region
          %p181 = scmp.lt.s32.totalorder %s20, 1
          %s182 = scalar_select %p181, %s20, 1
          %s183 = smul.addr %s182, 2
          %s184 = scalar_lea.vmem %s0, %s183
        $region24: #{tpu_custom_call.1} parent=19 // pred_fallthru
          _
        // Predicated region
        $region25: #{tpu_custom_call.1} parent=19 // pred_check
          %p185 = pneg %p73
        $region26: #{tpu_custom_call.1} parent=19 // pred_check_branch
          %187 = sbr.rel (%p185) target = $region28
        $region27: #{tpu_custom_call.1} parent=19 // pred_region
          %s188 = sand.u32 %s63, 1
          %s189 = scalar_lea.sflag [#allocation3], %s188
          %s190 = sand.u32 %s63, 1
          %s191 = smul.addr %s190, 512
          %s192 = scalar_lea.vmem [#allocation2], %s191
          %s193 = smul.u32 32, %s21
          %195 = vsyncadd %s189, 0
          %s196 = smul.addr %s20, 64
          %s197 = sadd.s32 %s193, %s196
          %s198 = smul.addr %s197, 8
          %s199 = scalar_lea.hbm %s1, %s198
          %s200 = sshll.u32 %s199, 4
          %s201 = int_to_ptr.hbm [resolvable:$true] %s200
          %s202 = sshll.u32 %s192, 4
          %s203 = int_to_ptr.vmem [resolvable:$true] %s202
          %208 = dma.hbm_to_vmem [thread:$0]  %s201, 8192, %s203, %s189, 4096, 4096, 256
        $region28: #{tpu_custom_call.1} parent=19 // pred_fallthru
          _
        // Predicated region
        $region29: #{tpu_custom_call.1} parent=19 // pred_check
          %p209 = pneg %p101
        $region30: #{tpu_custom_call.1} parent=19 // pred_check_branch
          %211 = sbr.rel (%p209) target = $region32
        $region31: #{tpu_custom_call.1} parent=19 // pred_region
          %s212 = smul.u32 32, %s21
          %p213 = scmp.lt.s32.totalorder %s20, 1
          %s214 = scalar_select %p213, %s20, 1
          %p215 = scmp.lt.s32.totalorder %s212, 31
          %s216 = scalar_select %p215, %s212, 31
          %s217 = smul.addr %s214, 32
          %s218 = sadd.s32 %s216, %s217
          %s219 = smul.addr %s218, 2
          %s220 = scalar_lea.vmem %s2, %s219
          %s221 = smul.u32 32, %s21
        $region32: #{tpu_custom_call.1} parent=19 // pred_fallthru
          _
      $region20: #{tpu_custom_call.1} parent=5 // pred_fallthru
        _
      %p222 = scmp.le.s32.totalorder 1, %s13
      %p223 = scmp.lt.s32.totalorder %s13, 3
      %p224 = pnand %p222, %p223
      %p225 = pneg %p224
      // Predicated region
      $region33: #{tpu_custom_call.1} parent=5 // pred_check
        _
      $region34: #{tpu_custom_call.1} parent=5 // pred_check_branch
        %227 = sbr.rel (%p224) target = $region36
      $region35: #{tpu_custom_call.1} parent=5 // pred_region
        %s228 = ssub.s32 %s13, 1
        %s229 = sand.u32 %s66, 1
        %s230 = scalar_lea.sflag [#allocation3], %s229
        %s231 = sand.u32 %s66, 1
        %s232 = smul.addr %s231, 512
        %s233 = scalar_lea.vmem [#allocation2], %s232
        // Predicated region
        $region37: #{tpu_custom_call.1} parent=35 // pred_check
          %p234 = pneg %p79
        $region38: #{tpu_custom_call.1} parent=35 // pred_check_branch
          %236 = sbr.rel (%p234) target = $region40
        $region39: #{tpu_custom_call.1} parent=35 // pred_region
          %238 = dma.done %s230, 8192
        $region40: #{tpu_custom_call.1} parent=35 // pred_fallthru
          _
        %p239 = scmp.lt.s32.totalorder %s22, 1
        %s240 = scalar_select %p239, %s22, 1
        %s241 = smul.addr %s240, 2
        %s242 = scalar_lea.vmem %s0, %s241
        %p243 = pneg %p51
        %p244 = pneg %p48
        %s245 = sand.u32 %s66, 1
        %s246 = scalar_lea.sflag [#allocation3], %s245
        %s247 = sand.u32 %s66, 1
        %s248 = smul.addr %s247, 512
        %s249 = scalar_lea.vmem [#allocation2], %s248
        %p250 = pneg %p79
        %p251 = pneg %p76
        %s252 = smul.u32 32, %s23
        %p253 = scmp.lt.s32.totalorder %s22, 1
        %s254 = scalar_select %p253, %s22, 1
        %p255 = scmp.lt.s32.totalorder %s252, 31
        %s256 = scalar_select %p255, %s252, 31
        %s257 = smul.addr %s254, 32
        %s258 = sadd.s32 %s256, %s257
        %s259 = smul.addr %s258, 2
        %s260 = scalar_lea.vmem %s2, %s259
        %p261 = pneg %p107
        %p262 = pneg %p104
        %p263 = pneg %p128
        %p264 = pneg %p125
        %p265 = pneg %p156
        %p266 = pneg %p153
        %s267 = smul.u32 32, %s23
        %p268 = scmp.lt.s32.totalorder %s22, 1
        %s269 = scalar_select %p268, %s22, 1
        %p270 = scmp.lt.s32.totalorder %s267, 31
        %s271 = scalar_select %p270, %s267, 31
        %s272 = smul.addr %s269, 32
        %s273 = sadd.s32 %s271, %s272
        %s274 = smul.addr %s273, 4
        %s275 = scalar_lea.vmem %s4, %s274
        %p276 = scmp.lt.s32.totalorder %s22, 1
        %s277 = scalar_select %p276, %s22, 1
        %s278 = smul.addr %s277, 2
        %s279 = scalar_lea.vmem %s0, %s278
        %s280 = smul.u32 32, %s23
        %s281 = smul.u32 32, %s23
        %p282 = scmp.lt.s32.totalorder %s22, 1
        %s283 = scalar_select %p282, %s22, 1
        %p284 = scmp.lt.s32.totalorder %s281, 31
        %s285 = scalar_select %p284, %s281, 31
        %s286 = smul.addr %s283, 32
        %s287 = sadd.s32 %s285, %s286
        %s288 = smul.addr %s287, 2
        %s289 = scalar_lea.vmem %s2, %s288
        %s290 = smul.u32 32, %s23
        %s291 = smul.u32 32, %s23
        %p292 = scmp.lt.s32.totalorder %s22, 1
        %s293 = scalar_select %p292, %s22, 1
        %p294 = scmp.lt.s32.totalorder %s291, 31
        %s295 = scalar_select %p294, %s291, 31
        %s296 = smul.addr %s293, 32
        %s297 = sadd.s32 %s295, %s296
        %s298 = smul.addr %s297, 4
        %s299 = scalar_lea.vmem %s4, %s298
        %s300 = smul.u32 32, %s23
        %v302 = vld [vmem:[%s233] sm:$0xff]
        %v303 = vld [vmem:[%s233 + $0x8] sm:$0xff]
        %v304 = vld [vmem:[%s233 + $0x10] sm:$0xff]
        %v305 = vld [vmem:[%s233 + $0x18] sm:$0xff]
        %v306 = vld [vmem:[%s233 + $0x20] sm:$0xff]
        %v307 = vld [vmem:[%s233 + $0x28] sm:$0xff]
        %v308 = vld [vmem:[%s233 + $0x30] sm:$0xff]
        %v309 = vld [vmem:[%s233 + $0x38] sm:$0xff]
        %v310 = vld [vmem:[%s233 + $0x40] sm:$0xff]
        %v311 = vld [vmem:[%s233 + $0x48] sm:$0xff]
        %v312 = vld [vmem:[%s233 + $0x50] sm:$0xff]
        %v313 = vld [vmem:[%s233 + $0x58] sm:$0xff]
        %v314 = vld [vmem:[%s233 + $0x60] sm:$0xff]
        %v315 = vld [vmem:[%s233 + $0x68] sm:$0xff]
        %v316 = vld [vmem:[%s233 + $0x70] sm:$0xff]
        %v317 = vld [vmem:[%s233 + $0x78] sm:$0xff]
        %v318 = vld [vmem:[%s233 + $0x80] sm:$0xff]
        %v319 = vld [vmem:[%s233 + $0x88] sm:$0xff]
        %v320 = vld [vmem:[%s233 + $0x90] sm:$0xff]
        %v321 = vld [vmem:[%s233 + $0x98] sm:$0xff]
        %v322 = vld [vmem:[%s233 + $0xa0] sm:$0xff]
        %v323 = vld [vmem:[%s233 + $0xa8] sm:$0xff]
        %v324 = vld [vmem:[%s233 + $0xb0] sm:$0xff]
        %v325 = vld [vmem:[%s233 + $0xb8] sm:$0xff]
        %v326 = vld [vmem:[%s233 + $0xc0] sm:$0xff]
        %v327 = vld [vmem:[%s233 + $0xc8] sm:$0xff]
        %v328 = vld [vmem:[%s233 + $0xd0] sm:$0xff]
        %v329 = vld [vmem:[%s233 + $0xd8] sm:$0xff]
        %v330 = vld [vmem:[%s233 + $0xe0] sm:$0xff]
        %v331 = vld [vmem:[%s233 + $0xe8] sm:$0xff]
        %v332 = vld [vmem:[%s233 + $0xf0] sm:$0xff]
        %v333 = vld [vmem:[%s233 + $0xf8] sm:$0xff]
        %v334 = vld [vmem:[%s233 + $0x100] sm:$0xff]
        %v335 = vld [vmem:[%s233 + $0x108] sm:$0xff]
        %v336 = vld [vmem:[%s233 + $0x110] sm:$0xff]
        %v337 = vld [vmem:[%s233 + $0x118] sm:$0xff]
        %v338 = vld [vmem:[%s233 + $0x120] sm:$0xff]
        %v339 = vld [vmem:[%s233 + $0x128] sm:$0xff]
        %v340 = vld [vmem:[%s233 + $0x130] sm:$0xff]
        %v341 = vld [vmem:[%s233 + $0x138] sm:$0xff]
        %v342 = vld [vmem:[%s233 + $0x140] sm:$0xff]
        %v343 = vld [vmem:[%s233 + $0x148] sm:$0xff]
        %v344 = vld [vmem:[%s233 + $0x150] sm:$0xff]
        %v345 = vld [vmem:[%s233 + $0x158] sm:$0xff]
        %v346 = vld [vmem:[%s233 + $0x160] sm:$0xff]
        %v347 = vld [vmem:[%s233 + $0x168] sm:$0xff]
        %v348 = vld [vmem:[%s233 + $0x170] sm:$0xff]
        %v349 = vld [vmem:[%s233 + $0x178] sm:$0xff]
        %v350 = vld [vmem:[%s233 + $0x180] sm:$0xff]
        %v351 = vld [vmem:[%s233 + $0x188] sm:$0xff]
        %v352 = vld [vmem:[%s233 + $0x190] sm:$0xff]
        %v353 = vld [vmem:[%s233 + $0x198] sm:$0xff]
        %v354 = vld [vmem:[%s233 + $0x1a0] sm:$0xff]
        %v355 = vld [vmem:[%s233 + $0x1a8] sm:$0xff]
        %v356 = vld [vmem:[%s233 + $0x1b0] sm:$0xff]
        %v357 = vld [vmem:[%s233 + $0x1b8] sm:$0xff]
        %v358 = vld [vmem:[%s233 + $0x1c0] sm:$0xff]
        %v359 = vld [vmem:[%s233 + $0x1c8] sm:$0xff]
        %v360 = vld [vmem:[%s233 + $0x1d0] sm:$0xff]
        %v361 = vld [vmem:[%s233 + $0x1d8] sm:$0xff]
        %v362 = vld [vmem:[%s233 + $0x1e0] sm:$0xff]
        %v363 = vld [vmem:[%s233 + $0x1e8] sm:$0xff]
        %v364 = vld [vmem:[%s233 + $0x1f0] sm:$0xff]
        %v365 = vld [vmem:[%s233 + $0x1f8] sm:$0xff]
        %v366 = vpack.c.bf16 %v334, %v302
        %v367 = vpack.c.bf16 %v335, %v303
        %v368 = vpack.c.bf16 %v336, %v304
        %v369 = vpack.c.bf16 %v337, %v305
        %v370 = vpack.c.bf16 %v338, %v306
        %v371 = vpack.c.bf16 %v339, %v307
        %v372 = vpack.c.bf16 %v340, %v308
        %v373 = vpack.c.bf16 %v341, %v309
        %v374 = vpack.c.bf16 %v342, %v310
        %v375 = vpack.c.bf16 %v343, %v311
        %v376 = vpack.c.bf16 %v344, %v312
        %v377 = vpack.c.bf16 %v345, %v313
        %v378 = vpack.c.bf16 %v346, %v314
        %v379 = vpack.c.bf16 %v347, %v315
        %v380 = vpack.c.bf16 %v348, %v316
        %v381 = vpack.c.bf16 %v349, %v317
        %v382 = vpack.c.bf16 %v350, %v318
        %v383 = vpack.c.bf16 %v351, %v319
        %v384 = vpack.c.bf16 %v352, %v320
        %v385 = vpack.c.bf16 %v353, %v321
        %v386 = vpack.c.bf16 %v354, %v322
        %v387 = vpack.c.bf16 %v355, %v323
        %v388 = vpack.c.bf16 %v356, %v324
        %v389 = vpack.c.bf16 %v357, %v325
        %v390 = vpack.c.bf16 %v358, %v326
        %v391 = vpack.c.bf16 %v359, %v327
        %v392 = vpack.c.bf16 %v360, %v328
        %v393 = vpack.c.bf16 %v361, %v329
        %v394 = vpack.c.bf16 %v362, %v330
        %v395 = vpack.c.bf16 %v363, %v331
        %v396 = vpack.c.bf16 %v364, %v332
        %v397 = vpack.c.bf16 %v365, %v333
        %v398 = vld [vmem:[%s279] sm:$0x3]
        %v399 = vld [vmem:[%s3] sm:$0x7]
        %401 = vset.pattern.permute.xlu0 0
        %402 = vperm.xlu0 %401, %v399
        %v403 = vpop.permute.xlu0 %402
        %vm405 = vcmask 130048
        %v407 = vsel %vm405, %v398, 0
        %409 = vmatpush.bf16.msra.mxu0 0
        %410 = vmatpush.bf16.msra.mxu0 0
        %411 = vmatpush.bf16.msra.mxu0 0
        %412 = vmatpush.bf16.msra.mxu0 0
        %413 = vmatpush.bf16.msra.mxu0 0
        %414 = vmatpush.bf16.msra.mxu0 0
        %415 = vmatpush.bf16.msra.mxu0 0
        %416 = vmatpush.bf16.msra.mxu0 %v366
        %417 = vmatmul.bf16.gmra.mxu0 %v407
        %v418 = vpop.f32.mrf.mxu0
        %v419 = vadd.f32 %v403, %v418
        %v420 = vpop.f32.mrf.mxu0
        %421 = vdwg.mxu0
        %422 = vmatpush.bf16.msra.mxu0 0
        %423 = vmatpush.bf16.msra.mxu0 0
        %424 = vmatpush.bf16.msra.mxu0 0
        %425 = vmatpush.bf16.msra.mxu0 0
        %426 = vmatpush.bf16.msra.mxu0 0
        %427 = vmatpush.bf16.msra.mxu0 0
        %428 = vmatpush.bf16.msra.mxu0 0
        %429 = vmatpush.bf16.msra.mxu0 %v367
        %430 = vmatmul.bf16.gmra.mxu0 %v407
        %v431 = vpop.f32.mrf.mxu0
        %v432 = vadd.f32 %v403, %v431
        %v433 = vpop.f32.mrf.mxu0
        %434 = vdwg.mxu0
        %435 = vmatpush.bf16.msra.mxu0 0
        %436 = vmatpush.bf16.msra.mxu0 0
        %437 = vmatpush.bf16.msra.mxu0 0
        %438 = vmatpush.bf16.msra.mxu0 0
        %439 = vmatpush.bf16.msra.mxu0 0
        %440 = vmatpush.bf16.msra.mxu0 0
        %441 = vmatpush.bf16.msra.mxu0 0
        %442 = vmatpush.bf16.msra.mxu0 %v368
        %443 = vmatmul.bf16.gmra.mxu0 %v407
        %v444 = vpop.f32.mrf.mxu0
        %v445 = vadd.f32 %v403, %v444
        %v446 = vpop.f32.mrf.mxu0
        %447 = vdwg.mxu0
        %448 = vmatpush.bf16.msra.mxu0 0
        %449 = vmatpush.bf16.msra.mxu0 0
        %450 = vmatpush.bf16.msra.mxu0 0
        %451 = vmatpush.bf16.msra.mxu0 0
        %452 = vmatpush.bf16.msra.mxu0 0
        %453 = vmatpush.bf16.msra.mxu0 0
        %454 = vmatpush.bf16.msra.mxu0 0
        %455 = vmatpush.bf16.msra.mxu0 %v369
        %456 = vmatmul.bf16.gmra.mxu0 %v407
        %v457 = vpop.f32.mrf.mxu0
        %v458 = vadd.f32 %v403, %v457
        %v459 = vpop.f32.mrf.mxu0
        %460 = vdwg.mxu0
        %461 = vmatpush.bf16.msra.mxu0 0
        %462 = vmatpush.bf16.msra.mxu0 0
        %463 = vmatpush.bf16.msra.mxu0 0
        %464 = vmatpush.bf16.msra.mxu0 0
        %465 = vmatpush.bf16.msra.mxu0 0
        %466 = vmatpush.bf16.msra.mxu0 0
        %467 = vmatpush.bf16.msra.mxu0 0
        %468 = vmatpush.bf16.msra.mxu0 %v370
        %469 = vmatmul.bf16.gmra.mxu0 %v407
        %v470 = vpop.f32.mrf.mxu0
        %v471 = vadd.f32 %v403, %v470
        %v472 = vpop.f32.mrf.mxu0
        %473 = vdwg.mxu0
        %474 = vmatpush.bf16.msra.mxu0 0
        %475 = vmatpush.bf16.msra.mxu0 0
        %476 = vmatpush.bf16.msra.mxu0 0
        %477 = vmatpush.bf16.msra.mxu0 0
        %478 = vmatpush.bf16.msra.mxu0 0
        %479 = vmatpush.bf16.msra.mxu0 0
        %480 = vmatpush.bf16.msra.mxu0 0
        %481 = vmatpush.bf16.msra.mxu0 %v371
        %482 = vmatmul.bf16.gmra.mxu0 %v407
        %v483 = vpop.f32.mrf.mxu0
        %v484 = vadd.f32 %v403, %v483
        %v485 = vpop.f32.mrf.mxu0
        %486 = vdwg.mxu0
        %487 = vmatpush.bf16.msra.mxu0 0
        %488 = vmatpush.bf16.msra.mxu0 0
        %489 = vmatpush.bf16.msra.mxu0 0
        %490 = vmatpush.bf16.msra.mxu0 0
        %491 = vmatpush.bf16.msra.mxu0 0
        %492 = vmatpush.bf16.msra.mxu0 0
        %493 = vmatpush.bf16.msra.mxu0 0
        %494 = vmatpush.bf16.msra.mxu0 %v372
        %495 = vmatmul.bf16.gmra.mxu0 %v407
        %v496 = vpop.f32.mrf.mxu0
        %v497 = vadd.f32 %v403, %v496
        %v498 = vpop.f32.mrf.mxu0
        %499 = vdwg.mxu0
        %500 = vmatpush.bf16.msra.mxu0 0
        %501 = vmatpush.bf16.msra.mxu0 0
        %502 = vmatpush.bf16.msra.mxu0 0
        %503 = vmatpush.bf16.msra.mxu0 0
        %504 = vmatpush.bf16.msra.mxu0 0
        %505 = vmatpush.bf16.msra.mxu0 0
        %506 = vmatpush.bf16.msra.mxu0 0
        %507 = vmatpush.bf16.msra.mxu0 %v373
        %508 = vmatmul.bf16.gmra.mxu0 %v407
        %v509 = vpop.f32.mrf.mxu0
        %v510 = vadd.f32 %v403, %v509
        %v511 = vpop.f32.mrf.mxu0
        %512 = vdwg.mxu0
        %513 = vmatpush.bf16.msra.mxu0 0
        %514 = vmatpush.bf16.msra.mxu0 0
        %515 = vmatpush.bf16.msra.mxu0 0
        %516 = vmatpush.bf16.msra.mxu0 0
        %517 = vmatpush.bf16.msra.mxu0 0
        %518 = vmatpush.bf16.msra.mxu0 0
        %519 = vmatpush.bf16.msra.mxu0 0
        %520 = vmatpush.bf16.msra.mxu0 %v374
        %521 = vmatmul.bf16.gmra.mxu0 %v407
        %v522 = vpop.f32.mrf.mxu0
        %v523 = vadd.f32 %v403, %v522
        %v524 = vpop.f32.mrf.mxu0
        %525 = vdwg.mxu0
        %526 = vmatpush.bf16.msra.mxu0 0
        %527 = vmatpush.bf16.msra.mxu0 0
        %528 = vmatpush.bf16.msra.mxu0 0
        %529 = vmatpush.bf16.msra.mxu0 0
        %530 = vmatpush.bf16.msra.mxu0 0
        %531 = vmatpush.bf16.msra.mxu0 0
        %532 = vmatpush.bf16.msra.mxu0 0
        %533 = vmatpush.bf16.msra.mxu0 %v375
        %534 = vmatmul.bf16.gmra.mxu0 %v407
        %v535 = vpop.f32.mrf.mxu0
        %v536 = vadd.f32 %v403, %v535
        %v537 = vpop.f32.mrf.mxu0
        %538 = vdwg.mxu0
        %539 = vmatpush.bf16.msra.mxu0 0
        %540 = vmatpush.bf16.msra.mxu0 0
        %541 = vmatpush.bf16.msra.mxu0 0
        %542 = vmatpush.bf16.msra.mxu0 0
        %543 = vmatpush.bf16.msra.mxu0 0
        %544 = vmatpush.bf16.msra.mxu0 0
        %545 = vmatpush.bf16.msra.mxu0 0
        %546 = vmatpush.bf16.msra.mxu0 %v376
        %547 = vmatmul.bf16.gmra.mxu0 %v407
        %v548 = vpop.f32.mrf.mxu0
        %v549 = vadd.f32 %v403, %v548
        %v550 = vpop.f32.mrf.mxu0
        %551 = vdwg.mxu0
        %552 = vmatpush.bf16.msra.mxu0 0
        %553 = vmatpush.bf16.msra.mxu0 0
        %554 = vmatpush.bf16.msra.mxu0 0
        %555 = vmatpush.bf16.msra.mxu0 0
        %556 = vmatpush.bf16.msra.mxu0 0
        %557 = vmatpush.bf16.msra.mxu0 0
        %558 = vmatpush.bf16.msra.mxu0 0
        %559 = vmatpush.bf16.msra.mxu0 %v377
        %560 = vmatmul.bf16.gmra.mxu0 %v407
        %v561 = vpop.f32.mrf.mxu0
        %v562 = vadd.f32 %v403, %v561
        %v563 = vpop.f32.mrf.mxu0
        %564 = vdwg.mxu0
        %565 = vmatpush.bf16.msra.mxu0 0
        %566 = vmatpush.bf16.msra.mxu0 0
        %567 = vmatpush.bf16.msra.mxu0 0
        %568 = vmatpush.bf16.msra.mxu0 0
        %569 = vmatpush.bf16.msra.mxu0 0
        %570 = vmatpush.bf16.msra.mxu0 0
        %571 = vmatpush.bf16.msra.mxu0 0
        %572 = vmatpush.bf16.msra.mxu0 %v378
        %573 = vmatmul.bf16.gmra.mxu0 %v407
        %v574 = vpop.f32.mrf.mxu0
        %v575 = vadd.f32 %v403, %v574
        %v576 = vpop.f32.mrf.mxu0
        %577 = vdwg.mxu0
        %578 = vmatpush.bf16.msra.mxu0 0
        %579 = vmatpush.bf16.msra.mxu0 0
        %580 = vmatpush.bf16.msra.mxu0 0
        %581 = vmatpush.bf16.msra.mxu0 0
        %582 = vmatpush.bf16.msra.mxu0 0
        %583 = vmatpush.bf16.msra.mxu0 0
        %584 = vmatpush.bf16.msra.mxu0 0
        %585 = vmatpush.bf16.msra.mxu0 %v379
        %586 = vmatmul.bf16.gmra.mxu0 %v407
        %v587 = vpop.f32.mrf.mxu0
        %v588 = vadd.f32 %v403, %v587
        %v589 = vpop.f32.mrf.mxu0
        %590 = vdwg.mxu0
        %591 = vmatpush.bf16.msra.mxu0 0
        %592 = vmatpush.bf16.msra.mxu0 0
        %593 = vmatpush.bf16.msra.mxu0 0
        %594 = vmatpush.bf16.msra.mxu0 0
        %595 = vmatpush.bf16.msra.mxu0 0
        %596 = vmatpush.bf16.msra.mxu0 0
        %597 = vmatpush.bf16.msra.mxu0 0
        %598 = vmatpush.bf16.msra.mxu0 %v380
        %599 = vmatmul.bf16.gmra.mxu0 %v407
        %v600 = vpop.f32.mrf.mxu0
        %v601 = vadd.f32 %v403, %v600
        %v602 = vpop.f32.mrf.mxu0
        %603 = vdwg.mxu0
        %604 = vmatpush.bf16.msra.mxu0 0
        %605 = vmatpush.bf16.msra.mxu0 0
        %606 = vmatpush.bf16.msra.mxu0 0
        %607 = vmatpush.bf16.msra.mxu0 0
        %608 = vmatpush.bf16.msra.mxu0 0
        %609 = vmatpush.bf16.msra.mxu0 0
        %610 = vmatpush.bf16.msra.mxu0 0
        %611 = vmatpush.bf16.msra.mxu0 %v381
        %612 = vmatmul.bf16.gmra.mxu0 %v407
        %v613 = vpop.f32.mrf.mxu0
        %v614 = vadd.f32 %v403, %v613
        %v615 = vpop.f32.mrf.mxu0
        %616 = vdwg.mxu0
        %617 = vmatpush.bf16.msra.mxu0 0
        %618 = vmatpush.bf16.msra.mxu0 0
        %619 = vmatpush.bf16.msra.mxu0 0
        %620 = vmatpush.bf16.msra.mxu0 0
        %621 = vmatpush.bf16.msra.mxu0 0
        %622 = vmatpush.bf16.msra.mxu0 0
        %623 = vmatpush.bf16.msra.mxu0 0
        %624 = vmatpush.bf16.msra.mxu0 %v382
        %625 = vmatmul.bf16.gmra.mxu0 %v407
        %v626 = vpop.f32.mrf.mxu0
        %v627 = vadd.f32 %v403, %v626
        %v628 = vpop.f32.mrf.mxu0
        %629 = vdwg.mxu0
        %630 = vmatpush.bf16.msra.mxu0 0
        %631 = vmatpush.bf16.msra.mxu0 0
        %632 = vmatpush.bf16.msra.mxu0 0
        %633 = vmatpush.bf16.msra.mxu0 0
        %634 = vmatpush.bf16.msra.mxu0 0
        %635 = vmatpush.bf16.msra.mxu0 0
        %636 = vmatpush.bf16.msra.mxu0 0
        %637 = vmatpush.bf16.msra.mxu0 %v383
        %638 = vmatmul.bf16.gmra.mxu0 %v407
        %v639 = vpop.f32.mrf.mxu0
        %v640 = vadd.f32 %v403, %v639
        %v641 = vpop.f32.mrf.mxu0
        %642 = vdwg.mxu0
        %643 = vmatpush.bf16.msra.mxu0 0
        %644 = vmatpush.bf16.msra.mxu0 0
        %645 = vmatpush.bf16.msra.mxu0 0
        %646 = vmatpush.bf16.msra.mxu0 0
        %647 = vmatpush.bf16.msra.mxu0 0
        %648 = vmatpush.bf16.msra.mxu0 0
        %649 = vmatpush.bf16.msra.mxu0 0
        %650 = vmatpush.bf16.msra.mxu0 %v384
        %651 = vmatmul.bf16.gmra.mxu0 %v407
        %v652 = vpop.f32.mrf.mxu0
        %v653 = vadd.f32 %v403, %v652
        %v654 = vpop.f32.mrf.mxu0
        %655 = vdwg.mxu0
        %656 = vmatpush.bf16.msra.mxu0 0
        %657 = vmatpush.bf16.msra.mxu0 0
        %658 = vmatpush.bf16.msra.mxu0 0
        %659 = vmatpush.bf16.msra.mxu0 0
        %660 = vmatpush.bf16.msra.mxu0 0
        %661 = vmatpush.bf16.msra.mxu0 0
        %662 = vmatpush.bf16.msra.mxu0 0
        %663 = vmatpush.bf16.msra.mxu0 %v385
        %664 = vmatmul.bf16.gmra.mxu0 %v407
        %v665 = vpop.f32.mrf.mxu0
        %v666 = vadd.f32 %v403, %v665
        %v667 = vpop.f32.mrf.mxu0
        %668 = vdwg.mxu0
        %669 = vmatpush.bf16.msra.mxu0 0
        %670 = vmatpush.bf16.msra.mxu0 0
        %671 = vmatpush.bf16.msra.mxu0 0
        %672 = vmatpush.bf16.msra.mxu0 0
        %673 = vmatpush.bf16.msra.mxu0 0
        %674 = vmatpush.bf16.msra.mxu0 0
        %675 = vmatpush.bf16.msra.mxu0 0
        %676 = vmatpush.bf16.msra.mxu0 %v386
        %677 = vmatmul.bf16.gmra.mxu0 %v407
        %v678 = vpop.f32.mrf.mxu0
        %v679 = vadd.f32 %v403, %v678
        %v680 = vpop.f32.mrf.mxu0
        %681 = vdwg.mxu0
        %682 = vmatpush.bf16.msra.mxu0 0
        %683 = vmatpush.bf16.msra.mxu0 0
        %684 = vmatpush.bf16.msra.mxu0 0
        %685 = vmatpush.bf16.msra.mxu0 0
        %686 = vmatpush.bf16.msra.mxu0 0
        %687 = vmatpush.bf16.msra.mxu0 0
        %688 = vmatpush.bf16.msra.mxu0 0
        %689 = vmatpush.bf16.msra.mxu0 %v387
        %690 = vmatmul.bf16.gmra.mxu0 %v407
        %v691 = vpop.f32.mrf.mxu0
        %v692 = vadd.f32 %v403, %v691
        %v693 = vpop.f32.mrf.mxu0
        %694 = vdwg.mxu0
        %695 = vmatpush.bf16.msra.mxu0 0
        %696 = vmatpush.bf16.msra.mxu0 0
        %697 = vmatpush.bf16.msra.mxu0 0
        %698 = vmatpush.bf16.msra.mxu0 0
        %699 = vmatpush.bf16.msra.mxu0 0
        %700 = vmatpush.bf16.msra.mxu0 0
        %701 = vmatpush.bf16.msra.mxu0 0
        %702 = vmatpush.bf16.msra.mxu0 %v388
        %703 = vmatmul.bf16.gmra.mxu0 %v407
        %v704 = vpop.f32.mrf.mxu0
        %v705 = vadd.f32 %v403, %v704
        %v706 = vpop.f32.mrf.mxu0
        %707 = vdwg.mxu0
        %708 = vmatpush.bf16.msra.mxu0 0
        %709 = vmatpush.bf16.msra.mxu0 0
        %710 = vmatpush.bf16.msra.mxu0 0
        %711 = vmatpush.bf16.msra.mxu0 0
        %712 = vmatpush.bf16.msra.mxu0 0
        %713 = vmatpush.bf16.msra.mxu0 0
        %714 = vmatpush.bf16.msra.mxu0 0
        %715 = vmatpush.bf16.msra.mxu0 %v389
        %716 = vmatmul.bf16.gmra.mxu0 %v407
        %v717 = vpop.f32.mrf.mxu0
        %v718 = vadd.f32 %v403, %v717
        %v719 = vpop.f32.mrf.mxu0
        %720 = vdwg.mxu0
        %721 = vmatpush.bf16.msra.mxu0 0
        %722 = vmatpush.bf16.msra.mxu0 0
        %723 = vmatpush.bf16.msra.mxu0 0
        %724 = vmatpush.bf16.msra.mxu0 0
        %725 = vmatpush.bf16.msra.mxu0 0
        %726 = vmatpush.bf16.msra.mxu0 0
        %727 = vmatpush.bf16.msra.mxu0 0
        %728 = vmatpush.bf16.msra.mxu0 %v390
        %729 = vmatmul.bf16.gmra.mxu0 %v407
        %v730 = vpop.f32.mrf.mxu0
        %v731 = vadd.f32 %v403, %v730
        %v732 = vpop.f32.mrf.mxu0
        %733 = vdwg.mxu0
        %734 = vmatpush.bf16.msra.mxu0 0
        %735 = vmatpush.bf16.msra.mxu0 0
        %736 = vmatpush.bf16.msra.mxu0 0
        %737 = vmatpush.bf16.msra.mxu0 0
        %738 = vmatpush.bf16.msra.mxu0 0
        %739 = vmatpush.bf16.msra.mxu0 0
        %740 = vmatpush.bf16.msra.mxu0 0
        %741 = vmatpush.bf16.msra.mxu0 %v391
        %742 = vmatmul.bf16.gmra.mxu0 %v407
        %v743 = vpop.f32.mrf.mxu0
        %v744 = vadd.f32 %v403, %v743
        %v745 = vpop.f32.mrf.mxu0
        %746 = vdwg.mxu0
        %747 = vmatpush.bf16.msra.mxu0 0
        %748 = vmatpush.bf16.msra.mxu0 0
        %749 = vmatpush.bf16.msra.mxu0 0
        %750 = vmatpush.bf16.msra.mxu0 0
        %751 = vmatpush.bf16.msra.mxu0 0
        %752 = vmatpush.bf16.msra.mxu0 0
        %753 = vmatpush.bf16.msra.mxu0 0
        %754 = vmatpush.bf16.msra.mxu0 %v392
        %755 = vmatmul.bf16.gmra.mxu0 %v407
        %v756 = vpop.f32.mrf.mxu0
        %v757 = vadd.f32 %v403, %v756
        %v758 = vpop.f32.mrf.mxu0
        %759 = vdwg.mxu0
        %760 = vmatpush.bf16.msra.mxu0 0
        %761 = vmatpush.bf16.msra.mxu0 0
        %762 = vmatpush.bf16.msra.mxu0 0
        %763 = vmatpush.bf16.msra.mxu0 0
        %764 = vmatpush.bf16.msra.mxu0 0
        %765 = vmatpush.bf16.msra.mxu0 0
        %766 = vmatpush.bf16.msra.mxu0 0
        %767 = vmatpush.bf16.msra.mxu0 %v393
        %768 = vmatmul.bf16.gmra.mxu0 %v407
        %v769 = vpop.f32.mrf.mxu0
        %v770 = vadd.f32 %v403, %v769
        %v771 = vpop.f32.mrf.mxu0
        %772 = vdwg.mxu0
        %773 = vmatpush.bf16.msra.mxu0 0
        %774 = vmatpush.bf16.msra.mxu0 0
        %775 = vmatpush.bf16.msra.mxu0 0
        %776 = vmatpush.bf16.msra.mxu0 0
        %777 = vmatpush.bf16.msra.mxu0 0
        %778 = vmatpush.bf16.msra.mxu0 0
        %779 = vmatpush.bf16.msra.mxu0 0
        %780 = vmatpush.bf16.msra.mxu0 %v394
        %781 = vmatmul.bf16.gmra.mxu0 %v407
        %v782 = vpop.f32.mrf.mxu0
        %v783 = vadd.f32 %v403, %v782
        %v784 = vpop.f32.mrf.mxu0
        %785 = vdwg.mxu0
        %786 = vmatpush.bf16.msra.mxu0 0
        %787 = vmatpush.bf16.msra.mxu0 0
        %788 = vmatpush.bf16.msra.mxu0 0
        %789 = vmatpush.bf16.msra.mxu0 0
        %790 = vmatpush.bf16.msra.mxu0 0
        %791 = vmatpush.bf16.msra.mxu0 0
        %792 = vmatpush.bf16.msra.mxu0 0
        %793 = vmatpush.bf16.msra.mxu0 %v395
        %794 = vmatmul.bf16.gmra.mxu0 %v407
        %v795 = vpop.f32.mrf.mxu0
        %v796 = vadd.f32 %v403, %v795
        %v797 = vpop.f32.mrf.mxu0
        %798 = vdwg.mxu0
        %799 = vmatpush.bf16.msra.mxu0 0
        %800 = vmatpush.bf16.msra.mxu0 0
        %801 = vmatpush.bf16.msra.mxu0 0
        %802 = vmatpush.bf16.msra.mxu0 0
        %803 = vmatpush.bf16.msra.mxu0 0
        %804 = vmatpush.bf16.msra.mxu0 0
        %805 = vmatpush.bf16.msra.mxu0 0
        %806 = vmatpush.bf16.msra.mxu0 %v396
        %807 = vmatmul.bf16.gmra.mxu0 %v407
        %v808 = vpop.f32.mrf.mxu0
        %v809 = vadd.f32 %v403, %v808
        %v810 = vpop.f32.mrf.mxu0
        %811 = vdwg.mxu0
        %812 = vmatpush.bf16.msra.mxu0 0
        %813 = vmatpush.bf16.msra.mxu0 0
        %814 = vmatpush.bf16.msra.mxu0 0
        %815 = vmatpush.bf16.msra.mxu0 0
        %816 = vmatpush.bf16.msra.mxu0 0
        %817 = vmatpush.bf16.msra.mxu0 0
        %818 = vmatpush.bf16.msra.mxu0 0
        %819 = vmatpush.bf16.msra.mxu0 %v397
        %820 = vmatmul.bf16.gmra.mxu0 %v407
        %v821 = vpop.f32.mrf.mxu0
        %v822 = vadd.f32 %v403, %v821
        %v823 = vpop.f32.mrf.mxu0
        %824 = vdwg.mxu0
        %v825 = vld [vmem:[%s289] sm:$0xff]
        %v826 = vld [vmem:[%s289 + $0x8] sm:$0xff]
        %v827 = vld [vmem:[%s289 + $0x10] sm:$0xff]
        %v828 = vld [vmem:[%s289 + $0x18] sm:$0xff]
        %v829 = vld [vmem:[%s289 + $0x20] sm:$0xff]
        %v830 = vld [vmem:[%s289 + $0x28] sm:$0xff]
        %v831 = vld [vmem:[%s289 + $0x30] sm:$0xff]
        %v832 = vld [vmem:[%s289 + $0x38] sm:$0xff]
        %v833 = vunpack.c.l.bf16 %v825
        %v834 = vunpack.c.h.bf16 %v825
        %v835 = vunpack.c.l.bf16 %v826
        %v836 = vunpack.c.h.bf16 %v826
        %v837 = vunpack.c.l.bf16 %v827
        %v838 = vunpack.c.h.bf16 %v827
        %v839 = vunpack.c.l.bf16 %v828
        %v840 = vunpack.c.h.bf16 %v828
        %v841 = vunpack.c.l.bf16 %v829
        %v842 = vunpack.c.h.bf16 %v829
        %v843 = vunpack.c.l.bf16 %v830
        %v844 = vunpack.c.h.bf16 %v830
        %v845 = vunpack.c.l.bf16 %v831
        %v846 = vunpack.c.h.bf16 %v831
        %v847 = vunpack.c.l.bf16 %v832
        %v848 = vunpack.c.h.bf16 %v832
        %865 = vst [vmem:[#allocation1] ss:$2 sm:$0xff] %v833
        %s866 = scalar_lea.vmem [#allocation1], 16
        %867 = vst [vmem:[%s866] ss:$2 sm:$0xff] %v834
        %s868 = scalar_lea.vmem [#allocation1], 32
        %869 = vst [vmem:[%s868] ss:$2 sm:$0xff] %v835
        %s870 = scalar_lea.vmem [#allocation1], 48
        %871 = vst [vmem:[%s870] ss:$2 sm:$0xff] %v836
        %v872 = vld.sshfl [vmem:[#allocation1] sm:$0xff pattern:$0x75316420]
        %v873 = vld.sshfl [vmem:[#allocation1 + $0x8] sm:$0xff pattern:$0x75316420]
        %v874 = vld.sshfl [vmem:[#allocation1 + $0x10] sm:$0xff pattern:$0x75316420]
        %v875 = vld.sshfl [vmem:[#allocation1 + $0x18] sm:$0xff pattern:$0x75316420]
        %v876 = vld.sshfl [vmem:[#allocation1 + $0x20] sm:$0xff pattern:$0x75316420]
        %v877 = vld.sshfl [vmem:[#allocation1 + $0x28] sm:$0xff pattern:$0x75316420]
        %v878 = vld.sshfl [vmem:[#allocation1 + $0x30] sm:$0xff pattern:$0x75316420]
        %v879 = vld.sshfl [vmem:[#allocation1 + $0x38] sm:$0xff pattern:$0x75316420]
        %880 = vst [vmem:[#allocation1] ss:$2 sm:$0xff] %v837
        %881 = vst [vmem:[%s866] ss:$2 sm:$0xff] %v838
        %882 = vst [vmem:[%s868] ss:$2 sm:$0xff] %v839
        %883 = vst [vmem:[%s870] ss:$2 sm:$0xff] %v840
        %v884 = vld.sshfl [vmem:[#allocation1] sm:$0xff pattern:$0x75316420]
        %v885 = vld.sshfl [vmem:[#allocation1 + $0x8] sm:$0xff pattern:$0x75316420]
        %v886 = vld.sshfl [vmem:[#allocation1 + $0x10] sm:$0xff pattern:$0x75316420]
        %v887 = vld.sshfl [vmem:[#allocation1 + $0x18] sm:$0xff pattern:$0x75316420]
        %v888 = vld.sshfl [vmem:[#allocation1 + $0x20] sm:$0xff pattern:$0x75316420]
        %v889 = vld.sshfl [vmem:[#allocation1 + $0x28] sm:$0xff pattern:$0x75316420]
        %v890 = vld.sshfl [vmem:[#allocation1 + $0x30] sm:$0xff pattern:$0x75316420]
        %v891 = vld.sshfl [vmem:[#allocation1 + $0x38] sm:$0xff pattern:$0x75316420]
        %892 = vst [vmem:[#allocation1] ss:$2 sm:$0xff] %v841
        %893 = vst [vmem:[%s866] ss:$2 sm:$0xff] %v842
        %894 = vst [vmem:[%s868] ss:$2 sm:$0xff] %v843
        %895 = vst [vmem:[%s870] ss:$2 sm:$0xff] %v844
        %v896 = vld.sshfl [vmem:[#allocation1] sm:$0xff pattern:$0x75316420]
        %v897 = vld.sshfl [vmem:[#allocation1 + $0x8] sm:$0xff pattern:$0x75316420]
        %v898 = vld.sshfl [vmem:[#allocation1 + $0x10] sm:$0xff pattern:$0x75316420]
        %v899 = vld.sshfl [vmem:[#allocation1 + $0x18] sm:$0xff pattern:$0x75316420]
        %v900 = vld.sshfl [vmem:[#allocation1 + $0x20] sm:$0xff pattern:$0x75316420]
        %v901 = vld.sshfl [vmem:[#allocation1 + $0x28] sm:$0xff pattern:$0x75316420]
        %v902 = vld.sshfl [vmem:[#allocation1 + $0x30] sm:$0xff pattern:$0x75316420]
        %v903 = vld.sshfl [vmem:[#allocation1 + $0x38] sm:$0xff pattern:$0x75316420]
        %904 = vst [vmem:[#allocation1] ss:$2 sm:$0xff] %v845
        %905 = vst [vmem:[%s866] ss:$2 sm:$0xff] %v846
        %906 = vst [vmem:[%s868] ss:$2 sm:$0xff] %v847
        %907 = vst [vmem:[%s870] ss:$2 sm:$0xff] %v848
        %v908 = vld.sshfl [vmem:[#allocation1] sm:$0xff pattern:$0x75316420]
        %v909 = vld.sshfl [vmem:[#allocation1 + $0x8] sm:$0xff pattern:$0x75316420]
        %v910 = vld.sshfl [vmem:[#allocation1 + $0x10] sm:$0xff pattern:$0x75316420]
        %v911 = vld.sshfl [vmem:[#allocation1 + $0x18] sm:$0xff pattern:$0x75316420]
        %v912 = vld.sshfl [vmem:[#allocation1 + $0x20] sm:$0xff pattern:$0x75316420]
        %v913 = vld.sshfl [vmem:[#allocation1 + $0x28] sm:$0xff pattern:$0x75316420]
        %v914 = vld.sshfl [vmem:[#allocation1 + $0x30] sm:$0xff pattern:$0x75316420]
        %v915 = vld.sshfl [vmem:[#allocation1 + $0x38] sm:$0xff pattern:$0x75316420]
        %v948 = vadd.f32 %v419, %v872
        %v949 = vadd.f32 %v432, %v873
        %v950 = vadd.f32 %v445, %v874
        %v951 = vadd.f32 %v458, %v875
        %v952 = vadd.f32 %v471, %v876
        %v953 = vadd.f32 %v484, %v877
        %v954 = vadd.f32 %v497, %v878
        %v955 = vadd.f32 %v510, %v879
        %v956 = vadd.f32 %v523, %v884
        %v957 = vadd.f32 %v536, %v885
        %v958 = vadd.f32 %v549, %v886
        %v959 = vadd.f32 %v562, %v887
        %v960 = vadd.f32 %v575, %v888
        %v961 = vadd.f32 %v588, %v889
        %v962 = vadd.f32 %v601, %v890
        %v963 = vadd.f32 %v614, %v891
        %v964 = vadd.f32 %v627, %v896
        %v965 = vadd.f32 %v640, %v897
        %v966 = vadd.f32 %v653, %v898
        %v967 = vadd.f32 %v666, %v899
        %v968 = vadd.f32 %v679, %v900
        %v969 = vadd.f32 %v692, %v901
        %v970 = vadd.f32 %v705, %v902
        %v971 = vadd.f32 %v718, %v903
        %v972 = vadd.f32 %v731, %v908
        %v973 = vadd.f32 %v744, %v909
        %v974 = vadd.f32 %v757, %v910
        %v975 = vadd.f32 %v770, %v911
        %v976 = vadd.f32 %v783, %v912
        %v977 = vadd.f32 %v796, %v913
        %v978 = vadd.f32 %v809, %v914
        %v979 = vadd.f32 %v822, %v915
        %v1012 = vrot.slane %v949, 4
        %v1013 = vrot.slane %v951, 4
        %v1014 = vrot.slane %v953, 4
        %v1015 = vrot.slane %v955, 4
        %v1016 = vrot.slane %v957, 4
        %v1017 = vrot.slane %v959, 4
        %v1018 = vrot.slane %v961, 4
        %v1019 = vrot.slane %v963, 4
        %v1020 = vrot.slane %v965, 4
        %v1021 = vrot.slane %v967, 4
        %v1022 = vrot.slane %v969, 4
        %v1023 = vrot.slane %v971, 4
        %v1024 = vrot.slane %v973, 4
        %v1025 = vrot.slane %v975, 4
        %v1026 = vrot.slane %v977, 4
        %v1027 = vrot.slane %v979, 4
        %vm1028 = vcmask 1043456
        %v1029 = vsel %vm1028, %v948, %v1012
        %v1030 = vsel %vm1028, %v950, %v1013
        %v1031 = vsel %vm1028, %v952, %v1014
        %v1032 = vsel %vm1028, %v954, %v1015
        %v1033 = vsel %vm1028, %v956, %v1016
        %v1034 = vsel %vm1028, %v958, %v1017
        %v1035 = vsel %vm1028, %v960, %v1018
        %v1036 = vsel %vm1028, %v962, %v1019
        %v1037 = vsel %vm1028, %v964, %v1020
        %v1038 = vsel %vm1028, %v966, %v1021
        %v1039 = vsel %vm1028, %v968, %v1022
        %v1040 = vsel %vm1028, %v970, %v1023
        %v1041 = vsel %vm1028, %v972, %v1024
        %v1042 = vsel %vm1028, %v974, %v1025
        %v1043 = vsel %vm1028, %v976, %v1026
        %v1044 = vsel %vm1028, %v978, %v1027
        %1061 = vst [vmem:[%s299] sm:$0x77] %v1029
        %1062 = vst [vmem:[%s299 + $0x8] sm:$0x77] %v1030
        %1063 = vst [vmem:[%s299 + $0x10] sm:$0x77] %v1031
        %1064 = vst [vmem:[%s299 + $0x18] sm:$0x77] %v1032
        %1065 = vst [vmem:[%s299 + $0x20] sm:$0x77] %v1033
        %1066 = vst [vmem:[%s299 + $0x28] sm:$0x77] %v1034
        %1067 = vst [vmem:[%s299 + $0x30] sm:$0x77] %v1035
        %1068 = vst [vmem:[%s299 + $0x38] sm:$0x77] %v1036
        %1069 = vst [vmem:[%s299 + $0x40] sm:$0x77] %v1037
        %1070 = vst [vmem:[%s299 + $0x48] sm:$0x77] %v1038
        %1071 = vst [vmem:[%s299 + $0x50] sm:$0x77] %v1039
        %1072 = vst [vmem:[%s299 + $0x58] sm:$0x77] %v1040
        %1073 = vst [vmem:[%s299 + $0x60] sm:$0x77] %v1041
        %1074 = vst [vmem:[%s299 + $0x68] sm:$0x77] %v1042
        %1075 = vst [vmem:[%s299 + $0x70] sm:$0x77] %v1043
        %1076 = vst [vmem:[%s299 + $0x78] sm:$0x77] %v1044
        %s1077 = smul.u32 32, %s23
        %p1078 = scmp.lt.s32.totalorder %s22, 1
        %s1079 = scalar_select %p1078, %s22, 1
        %p1080 = scmp.lt.s32.totalorder %s1077, 31
        %s1081 = scalar_select %p1080, %s1077, 31
        %s1082 = smul.addr %s1079, 32
        %s1083 = sadd.s32 %s1081, %s1082
        %s1084 = smul.addr %s1083, 4
        %s1085 = scalar_lea.vmem %s4, %s1084
        // Predicated region
        $region41: #{tpu_custom_call.1} parent=35 // pred_check
          %p1086 = pneg %p153
        $region42: #{tpu_custom_call.1} parent=35 // pred_check_branch
          %1088 = sbr.rel (%p1086) target = $region44
        $region43: #{tpu_custom_call.1} parent=35 // pred_region
          %s1089 = smul.u32 32, %s23
        $region44: #{tpu_custom_call.1} parent=35 // pred_fallthru
          _
      $region36: #{tpu_custom_call.1} parent=5 // pred_fallthru
        _
      %p1090 = scmp.le.s32.totalorder 2, %s13
      // Predicated region
      $region45: #{tpu_custom_call.1} parent=5 // pred_check
        %p1091 = pneg %p1090
      $region46: #{tpu_custom_call.1} parent=5 // pred_check_branch
        %1093 = sbr.rel (%p1091) target = $region48
      $region47: #{tpu_custom_call.1} parent=5 // pred_region
        %s1094 = ssub.s32 %s13, 2
        // Predicated region
        $region49: #{tpu_custom_call.1} parent=47 // pred_check
          %p1095 = pneg %p159
        $region50: #{tpu_custom_call.1} parent=47 // pred_check_branch
          %1097 = sbr.rel (%p1095) target = $region52
        $region51: #{tpu_custom_call.1} parent=47 // pred_region
          %s1098 = smul.u32 32, %s25
          %p1099 = scmp.lt.s32.totalorder %s24, 1
          %s1100 = scalar_select %p1099, %s24, 1
          %p1101 = scmp.lt.s32.totalorder %s1098, 31
          %s1102 = scalar_select %p1101, %s1098, 31
          %s1103 = smul.addr %s1100, 32
          %s1104 = sadd.s32 %s1102, %s1103
          %s1105 = smul.addr %s1104, 4
          %s1106 = scalar_lea.vmem %s4, %s1105
        $region52: #{tpu_custom_call.1} parent=47 // pred_fallthru
          _
      $region48: #{tpu_custom_call.1} parent=5 // pred_fallthru
        _
    $region6: #{tpu_custom_call.1} parent=1 // loop_footer
      %s17 = sadd.s32 1, %s13
    $region7: #{tpu_custom_call.1} parent=1 // loop_footer_branch
      %12 = sbr.rel target = $region3
    $region8: #{tpu_custom_call.1} parent=1 // loop_exit
      _
    %1107 = vsyncpa [#allocation3], 1
    %s1108 = scalar_lea.sflag [#allocation3], 1
    %1109 = vsyncpa %s1108, 1

</llo_original>
